<compile_context>
chip_gen: v5e
topology: v5e:2x2
jax: 0.10.0
libtpu: 0.0.40
codegen_flags: <defaults>
</compile_context>

<pallas_src>
import math

import jax
import jax.numpy as jnp
from jax.experimental import pallas as pl
from jax.experimental.pallas import tpu as pltpu


_MiB = 1024 * 1024
# Double-buffered tile working-set budget.  Kept well under v7x's 64 MiB
# physical VMEM (and the 48 MiB scoped limit below); tiny vs v5e/v6e's 128 MiB.
_VMEM_TILE_BUDGET = 28 * _MiB
_VMEM_LIMIT_BYTES = 48 * _MiB


def _round_up(x: int, m: int) -> int:
    return ((x + m - 1) // m) * m


def _sublane(dtype) -> int:
    """Native sublane packing: 8 for 4-byte, 16 for 2-byte, 32 for 1-byte dtypes."""
    return max(8, 32 // jnp.dtype(dtype).itemsize)


# ----------------------------------------------------------------------------
# Kernels
# ----------------------------------------------------------------------------
def _linear_kernel_fused(x_ref, w_ref, b_ref, o_ref):
    """Whole-K tile: one MXU matmul, bias add, single store."""
    acc = jnp.dot(x_ref[...], w_ref[...], preferred_element_type=jnp.float32)
    o_ref[...] = (acc + b_ref[...]).astype(o_ref.dtype)


def _linear_kernel_ktiled_f32out(x_ref, w_ref, b_ref, o_ref):
    """K tiled, f32 output: accumulate directly into the resident output block
    (its (i, j) block index is k-invariant) -- no scratch, no final copy."""
    k = pl.program_id(2)
    p = jnp.dot(x_ref[...], w_ref[...], preferred_element_type=jnp.float32)

    @pl.when(k == 0)
    def _():
        o_ref[...] = p            # folded first iteration (no zero + add)

    @pl.when(k != 0)
    def _():
        o_ref[...] += p

    @pl.when(k == pl.num_programs(2) - 1)
    def _():
        o_ref[...] += b_ref[...]


def _linear_kernel_ktiled_acc(x_ref, w_ref, b_ref, o_ref, acc_ref):
    """K tiled, low-precision output: f32 scratch accumulator, cast once."""
    k = pl.program_id(2)
    p = jnp.dot(x_ref[...], w_ref[...], preferred_element_type=jnp.float32)

    @pl.when(k == 0)
    def _():
        acc_ref[...] = p          # folded first iteration

    @pl.when(k != 0)
    def _():
        acc_ref[...] += p

    @pl.when(k == pl.num_programs(2) - 1)
    def _():
        o_ref[...] = (acc_ref[...] + b_ref[...]).astype(o_ref.dtype)


# ----------------------------------------------------------------------------
# Wrapper
# ----------------------------------------------------------------------------
def linear_norm_forward(x, weight, bias=None, *, compute_dtype=None):
    """y = x @ weight + bias.

    weight: (in_dim, out_dim)  (transpose of PyTorch Linear.weight)
    bias:   (out_dim,) or None
    compute_dtype: optional MXU input dtype (e.g. jnp.bfloat16) for v6e/v7x
      throughput; accumulation stays f32 and the output keeps x.dtype.
    """
    in_dim, out_dim = weight.shape
    orig_shape = x.shape
    out_dtype = x.dtype
    x2d = x.reshape(-1, in_dim)                       # glue reshape, no copy

    if compute_dtype is not None:
        x2d = x2d.astype(compute_dtype)
        weight = weight.astype(compute_dtype)

    M, K, N = x2d.shape[0], in_dim, out_dim
    if bias is None:
        bias = jnp.zeros((N,), jnp.float32)
    b2d = bias.astype(jnp.float32).reshape(1, N)

    xsz = x2d.dtype.itemsize
    wsz = weight.dtype.itemsize
    osz = jnp.dtype(out_dtype).itemsize
    f32_out = jnp.dtype(out_dtype) == jnp.float32

    # --- tile selection ------------------------------------------------------
    sub = _sublane(x2d.dtype)
    tm = 512 if M >= 512 else _round_up(M, sub)
    tn = 512 if N >= 512 else N                       # full dim is always legal

    def tile_bytes(tk, with_scratch):
        b = 2 * (tm * tk * xsz + tk * tn * wsz)       # double-buffered inputs
        b += 2 * (tn * 4)                             # bias (f32)
        b += 2 * (tm * tn * osz)                      # double-buffered output
        if with_scratch:
            b += tm * tn * 4
        return b

    collapse_k = tile_bytes(K, with_scratch=False) <= _VMEM_TILE_BUDGET

    if collapse_k:
        tk, n_k = K, 1                                # no K padding needed
    else:
        tk = 256
        for cand in (2048, 1024, 512):
            if tile_bytes(cand, with_scratch=not f32_out) <= _VMEM_TILE_BUDGET:
                tk = cand
                break
        Kp = _round_up(K, tk)
        if Kp != K:
            # Zero-padding the reduction dim is the only correctness-critical
            # padding; M/N edges are handled by Pallas block masking.
            x2d = jnp.pad(x2d, ((0, 0), (0, Kp - K)))
            weight = jnp.pad(weight, ((0, Kp - K), (0, 0)))
        n_k = Kp // tk

    n_m = pl.cdiv(M, tm)
    n_n = pl.cdiv(N, tn)
    # Larger parallel extent first so both v7x TensorCores get tiles even when
    # one parallel axis has a single tile (no effect on v5e/v6e).
    m_major = n_m >= n_n

    if collapse_k:
        if m_major:
            grid = (n_m, n_n)
            x_map = lambda i, j: (i, 0)
            w_map = lambda i, j: (0, j)
            b_map = lambda i, j: (0, j)
            o_map = lambda i, j: (i, j)
        else:
            grid = (n_n, n_m)
            x_map = lambda j, i: (i, 0)
            w_map = lambda j, i: (0, j)
            b_map = lambda j, i: (0, j)
            o_map = lambda j, i: (i, j)
        dims = ("parallel", "parallel")
        kernel = _linear_kernel_fused
        scratch = []
    else:
        if m_major:
            grid = (n_m, n_n, n_k)
            x_map = lambda i, j, k: (i, k)
            w_map = lambda i, j, k: (k, j)
            b_map = lambda i, j, k: (0, j)
            o_map = lambda i, j, k: (i, j)
        else:
            grid = (n_n, n_m, n_k)
            x_map = lambda j, i, k: (i, k)
            w_map = lambda j, i, k: (k, j)
            b_map = lambda j, i, k: (0, j)
            o_map = lambda j, i, k: (i, j)
        dims = ("parallel", "parallel", "arbitrary")
        if f32_out:
            kernel = _linear_kernel_ktiled_f32out
            scratch = []
        else:
            kernel = _linear_kernel_ktiled_acc
            scratch = [pltpu.VMEM((tm, tn), jnp.float32)]

    cost = pl.CostEstimate(
        flops=2 * M * K * N,
        transcendentals=0,
        bytes_accessed=(x2d.size * xsz + weight.size * wsz
                        + b2d.size * 4 + M * N * osz),
    )

    out = pl.pallas_call(
        kernel,
        out_shape=jax.ShapeDtypeStruct((M, N), out_dtype),
        grid_spec=pltpu.PrefetchScalarGridSpec(
            num_scalar_prefetch=0,
            grid=grid,
            in_specs=[
                pl.BlockSpec((tm, tk), x_map),        # x tile
                pl.BlockSpec((tk, tn), w_map),        # W tile
                pl.BlockSpec((1, tn), b_map),         # bias tile
            ],
            out_specs=pl.BlockSpec((tm, tn), o_map),
            scratch_shapes=scratch,
        ),
        compiler_params=pltpu.CompilerParams(
            dimension_semantics=dims,
            vmem_limit_bytes=_VMEM_LIMIT_BYTES),
        cost_estimate=cost,
    )(x2d, weight, b2d)

    return out.reshape(*orig_shape[:-1], out_dim)


# ----------------------------------------------------------------------------
# Parameter init matching torch (xavier_uniform_ weight, default Linear bias)
# ----------------------------------------------------------------------------
def init_linear_norm_params(key, in_dim, out_dim, w_init_gain="linear",
                            dtype=jnp.float32):
    gain = 1.0  # torch.nn.init.calculate_gain('linear') == 1.0
    wkey, bkey = jax.random.split(key)
    bound_w = gain * math.sqrt(6.0 / (in_dim + out_dim))
    w_pt = jax.random.uniform(wkey, (out_dim, in_dim), dtype,
                              minval=-bound_w, maxval=bound_w)
    weight = w_pt.T  # store as (in_dim, out_dim) for the kernel
    bound_b = 1.0 / math.sqrt(in_dim)
    bias = jax.random.uniform(bkey, (out_dim,), dtype,
                              minval=-bound_b, maxval=bound_b)
    return weight, bias


if __name__ == "__main__":
    key = jax.random.PRNGKey(0)
    kx, kp = jax.random.split(key)

    batch, seq, in_dim, out_dim = 2, 8, 32, 64
    x = jax.random.normal(kx, (batch, seq, in_dim), dtype=jnp.float32)
    weight, bias = init_linear_norm_params(kp, in_dim, out_dim)

    y = linear_norm_forward(x, weight, bias)
    jax.block_until_ready(y)

    # correctness check against plain-JAX reference
    y_ref = x @ weight + bias
    assert y.shape == (batch, seq, out_dim)
    assert jnp.allclose(y, y_ref, atol=1e-5, rtol=1e-5)

    print("KERNEL_OK")
</pallas_src>

<mosaic_0001>
module attributes {stable_mosaic.version = 11 : i64} {
  func.func @_linear_kernel_fused(%arg0: i32, %arg1: i32, %arg2: memref<16x32xf32, #tpu.memory_space<vmem>>, %arg3: memref<32x64xf32, #tpu.memory_space<vmem>>, %arg4: memref<1x64xf32, #tpu.memory_space<vmem>>, %arg5: memref<16x64xf32, #tpu.memory_space<vmem>>) attributes {dimension_semantics = [#tpu.dimension_semantics<parallel>, #tpu.dimension_semantics<parallel>], iteration_bounds = array<i64: 1, 1>, scalar_prefetch = 0 : i64, scratch_operands = 0 : i64, tpu.core_type = #tpu.core_type<tc>, window_params = [{transform_indices = @transform_0, window_bounds = array<i64: 16, 32>}, {transform_indices = @transform_1, window_bounds = array<i64: 32, 64>}, {transform_indices = @transform_2, window_bounds = array<i64: 1, 64>}, {transform_indices = @transform_3, window_bounds = array<i64: 16, 64>}]} {
    %c0 = arith.constant 0 : index
    %c0_0 = arith.constant 0 : index
    %0 = vector.load %arg2[%c0, %c0_0] : memref<16x32xf32, #tpu.memory_space<vmem>>, vector<16x32xf32>
    %c0_1 = arith.constant 0 : index
    %c0_2 = arith.constant 0 : index
    %1 = vector.load %arg3[%c0_1, %c0_2] : memref<32x64xf32, #tpu.memory_space<vmem>>, vector<32x64xf32>
    %cst = arith.constant dense<0.000000e+00> : vector<16x64xf32>
    %2 = tpu.matmul %0, %1, %cst {dimension_numbers = #tpu.dot_dimension_numbers<[1], [0], [0], [1], [0, 0, 1, 1], [], []>} : vector<16x32xf32>, vector<32x64xf32>, vector<16x64xf32> -> vector<16x64xf32>
    %c0_3 = arith.constant 0 : index
    %c0_4 = arith.constant 0 : index
    %3 = vector.load %arg4[%c0_3, %c0_4] : memref<1x64xf32, #tpu.memory_space<vmem>>, vector<1x64xf32>
    %4 = vector.broadcast %3 : vector<1x64xf32> to vector<16x64xf32>
    %5 = arith.addf %2, %4 : vector<16x64xf32>
    %c0_5 = arith.constant 0 : index
    %c0_6 = arith.constant 0 : index
    %6 = vector.load %arg5[%c0_5, %c0_6] : memref<16x64xf32, #tpu.memory_space<vmem>>, vector<16x64xf32>
    tpu.vector_store %arg5[%c0_5, %c0_6], %5 {strides = array<i32>} : memref<16x64xf32, #tpu.memory_space<vmem>>, vector<16x64xf32>,
    return
  }
  func.func @transform_0(%arg0: i32, %arg1: i32) -> (i32, i32) {
    %c0_i32 = arith.constant 0 : i32
    %c0_i32_0 = arith.constant 0 : i32
    return %arg0, %c0_i32 : i32, i32
  }
  func.func @transform_1(%arg0: i32, %arg1: i32) -> (i32, i32) {
    %c0_i32 = arith.constant 0 : i32
    %c0_i32_0 = arith.constant 0 : i32
    return %c0_i32, %arg1 : i32, i32
  }
  func.func @transform_2(%arg0: i32, %arg1: i32) -> (i32, i32) {
    %c0_i32 = arith.constant 0 : i32
    %c0_i32_0 = arith.constant 0 : i32
    return %c0_i32, %arg1 : i32, i32
  }
  func.func @transform_3(%arg0: i32, %arg1: i32) -> (i32, i32) {
    %c0_i32 = arith.constant 0 : i32
    return %arg0, %arg1 : i32, i32
  }
}

</mosaic_0001>

<llo_original>
// kernel: tpu_custom_call.1
$region0: #{tpu_custom_call.1}
  #allocation0 [shape = 'u32[]', space=smem, size = 0x4, offset = 0x4, fixed_abs, tag = 'smem constant byte address 0x4 - core index']
  #allocation1 [shape = 'u32[72,128]{1,0:T(1,128)}', space=vmem, size = 0x9000, scoped, tag = 'internal scratch']
  %s0 = inlined_call_operand.hbm [shape: f32[16,32], index: 0, kind: input, shape index: {}]
  %s1 = inlined_call_operand.hbm [shape: f32[32,64], index: 1, kind: input, shape index: {}]
  %s2 = inlined_call_operand.vmem [shape: f32[1,64], index: 2, kind: input, shape index: {}]
  %s3 = inlined_call_operand.hbm [shape: f32[16,64], index: 3, kind: output, shape index: {}]
  %s4 = sld [smem:[#allocation0]]
  $region30: #{tpu_custom_call.1} parent=0
    _
  %s6 = ssub.s32 1, %s4
  %s7 = scalar_select 0, %s6, %s4
  $region1: #{tpu_custom_call.1} parent=0
    #allocation2 [shape = 'u8[8192]{0}', space=vmem, size = 0x2000, scoped, tag = 'input window, operand 0, single buffered']
    #allocation3 [shape = 's32[1]{0}', space=sflag, size = 0x4, scoped, tag = 'scoped memory for tpu_custom_call.1']
    #allocation4 [shape = 's32[1]{0}', space=sflag, size = 0x4, scoped, tag = 'scoped memory for tpu_custom_call.1']
    #allocation5 [shape = 'u8[16384]{0}', space=vmem, size = 0x4000, scoped, tag = 'input window, operand 1, single buffered']
    #allocation6 [shape = 's32[1]{0}', space=sflag, size = 0x4, scoped, tag = 'scoped memory for tpu_custom_call.1']
    #allocation7 [shape = 'u8[8192]{0}', space=vmem, size = 0x2000, scoped, tag = 'output window, operand 0, single buffered']
    %8 = vsyncpa [#allocation3], 0
    %9 = vsyncpa [#allocation6], 0
    %10 = vsyncpa [#allocation4], 0
    // Predicated region
    $region2: #{tpu_custom_call.1} parent=1 // pred_check
      _
    $region3: #{tpu_custom_call.1} parent=1 // pred_check_branch
      %12 = sbr.rel (0) target = $region5
    $region4: #{tpu_custom_call.1} parent=1 // pred_region
      %14 = vsyncadd [#allocation3], 0
      %s15 = sshll.u32 %s0, 4
      %s16 = int_to_ptr.hbm [resolvable:$true] %s15
      %s17 = sshll.u32 [#allocation2], 4
      %s18 = int_to_ptr.vmem [resolvable:$true] %s17
      %23 = dma.hbm_to_vmem [thread:$0]  %s16, 256, %s18, [#allocation3], 128, 128, 8
    $region5: #{tpu_custom_call.1} parent=1 // pred_fallthru
      _
    // Predicated region
    $region6: #{tpu_custom_call.1} parent=1 // pred_check
      _
    $region7: #{tpu_custom_call.1} parent=1 // pred_check_branch
      %25 = sbr.rel (0) target = $region9
    $region8: #{tpu_custom_call.1} parent=1 // pred_region
      %27 = vsyncadd [#allocation6], 0
      %s28 = sshll.u32 %s1, 4
      %s29 = int_to_ptr.hbm [resolvable:$true] %s28
      %s30 = sshll.u32 [#allocation5], 4
      %s31 = int_to_ptr.vmem [resolvable:$true] %s30
      %36 = dma.hbm_to_vmem [thread:$0]  %s29, 512, %s31, [#allocation6], 128, 128, 8
    $region9: #{tpu_custom_call.1} parent=1 // pred_fallthru
      _
    // Predicated region
    $region10: #{tpu_custom_call.1} parent=1 // pred_check
      _
    $region11: #{tpu_custom_call.1} parent=1 // pred_check_branch
      %38 = sbr.rel (0) target = $region13
    $region12: #{tpu_custom_call.1} parent=1 // pred_region
      _
    $region13: #{tpu_custom_call.1} parent=1 // pred_fallthru
      _
    // Predicated region
    $region14: #{tpu_custom_call.1} parent=1 // pred_check
      _
    $region15: #{tpu_custom_call.1} parent=1 // pred_check_branch
      %40 = sbr.rel (0) target = $region17
    $region16: #{tpu_custom_call.1} parent=1 // pred_region
      %42 = dma.done [#allocation3], 256
    $region17: #{tpu_custom_call.1} parent=1 // pred_fallthru
      _
    // Predicated region
    $region18: #{tpu_custom_call.1} parent=1 // pred_check
      _
    $region19: #{tpu_custom_call.1} parent=1 // pred_check_branch
      %44 = sbr.rel (0) target = $region21
    $region20: #{tpu_custom_call.1} parent=1 // pred_region
      %46 = dma.done [#allocation6], 512
    $region21: #{tpu_custom_call.1} parent=1 // pred_fallthru
      _
    %v47 = vld [vmem:[#allocation2] sm:$0xff]
    %v48 = vld [vmem:[#allocation2 + $0x8] sm:$0xff]
    %v49 = vld [vmem:[#allocation5] sm:$0xff]
    %v50 = vld [vmem:[#allocation5 + $0x8] sm:$0xff]
    %v51 = vld [vmem:[#allocation5 + $0x10] sm:$0xff]
    %v52 = vld [vmem:[#allocation5 + $0x18] sm:$0xff]
    %v53 = vld [vmem:[%s2] sm:$0x1]
    %v55 = vperm.slane %v53, 0
    %vm57 = vcmask 261120
    %v59 = vsel %vm57, %v47, 0
    %v62 = vsel %vm57, %v48, 0
    %64 = vmatpush.msra.mxu0 0.0
    %65 = vmatpush.msra.mxu0 0.0
    %66 = vmatpush.msra.mxu0 0.0
    %67 = vmatpush.msra.mxu0 0.0
    %68 = vmatpush.msra.mxu0 0.0
    %69 = vmatpush.msra.mxu0 0.0
    %70 = vmatpush.msra.mxu0 0.0
    %71 = vmatpush.msra.mxu0 0.0
    %72 = vmatpush.msra.mxu0 0.0
    %73 = vmatpush.msra.mxu0 0.0
    %74 = vmatpush.msra.mxu0 0.0
    %75 = vmatpush.msra.mxu0 0.0
    %76 = vmatpush.msra.mxu0 %v52
    %77 = vmatpush.msra.mxu0 %v51
    %78 = vmatpush.msra.mxu0 %v50
    %79 = vmatpush.msra.mxu0 %v49
    %80 = vmatmul.f32.gmra.mxu0 %v59
    %v81 = vpop.f32.mrf.mxu0
    %v82 = vadd.f32 %v55, %v81
    %83 = vmatmul.f32.gmra.mxu0 %v62
    %v84 = vpop.f32.mrf.mxu0
    %v85 = vadd.f32 %v55, %v84
    %86 = vdwg.mxu0
    %vm87 = vcmask 523264
    %88 = vst.msk [vmem:[#allocation7] sm:$0xff] %vm87, %v82
    %89 = vst.msk [vmem:[#allocation7 + $0x8] sm:$0xff] %vm87, %v85
    // Predicated region
    $region22: #{tpu_custom_call.1} parent=1 // pred_check
      _
    $region23: #{tpu_custom_call.1} parent=1 // pred_check_branch
      %91 = sbr.rel (0) target = $region25
    $region24: #{tpu_custom_call.1} parent=1 // pred_region
      %93 = vsyncadd [#allocation4], 0
      %s94 = sshll.u32 [#allocation7], 4
      %s95 = int_to_ptr.vmem [resolvable:$true] %s94
      %s96 = sshll.u32 %s3, 4
      %s97 = int_to_ptr.hbm [resolvable:$true] %s96
      %102 = dma.vmem_to_hbm [thread:$0]  %s95, 256, %s97, [#allocation4], 128, 128, 8
    $region25: #{tpu_custom_call.1} parent=1 // pred_fallthru
      _
    // Predicated region
    $region26: #{tpu_custom_call.1} parent=1 // pred_check
      _
    $region27: #{tpu_custom_call.1} parent=1 // pred_check_branch
      %104 = sbr.rel (0) target = $region29
    $region28: #{tpu_custom_call.1} parent=1 // pred_region
      %106 = dma.done [#allocation4], 256
    $region29: #{tpu_custom_call.1} parent=1 // pred_fallthru
      _
    %107 = vsyncpa [#allocation3], 1
    %108 = vsyncpa [#allocation6], 1
    %109 = vsyncpa [#allocation4], 1

</llo_original>
